<compile_context>
chip_gen: v6e
topology: v6e:2x2x1
jax: 0.10.0
libtpu: 0.0.40
codegen_flags: <defaults>
</compile_context>

<pallas_src>
import functools

import jax
import jax.numpy as jnp
from jax.experimental import pallas as pl
from jax.experimental.pallas import tpu as pltpu

NEG_SLOPE = 0.01   # F.leaky_relu default negative slope
NORM_EPS = 1e-12   # F.normalize default eps


def _round_up(x, m):
    return ((x + m - 1) // m) * m


def _pad_rows(x, rows_padded):
    r = x.shape[0]
    if rows_padded == r:
        return x
    pad = ((0, rows_padded - r),) + tuple((0, 0) for _ in range(x.ndim - 1))
    return jnp.pad(x, pad)


# ----------------------------------------------------------------------------
# Pallas kernel 1: fused encoder MLP
#   h = leaky_relu(x @ W1 + b1); h = h @ W2 + b2; h = leaky_relu(h @ W1 + b1)
# (the second application of layer1 mirrors the reference code exactly)
# bf16 operands into the MXU, f32 accumulation, bias/activation in f32.
# ----------------------------------------------------------------------------
def _encoder_kernel(x_ref, w1_ref, b1_ref, w2_ref, b2_ref, o_ref):
    w1 = w1_ref[...]                      # bf16, resident across grid steps
    w2 = w2_ref[...]                      # bf16
    b1 = b1_ref[...]                      # f32, hoisted (used twice)
    b2 = b2_ref[...]                      # f32

    h = jnp.dot(x_ref[...], w1, preferred_element_type=jnp.float32) + b1
    h = jnp.where(h > 0, h, NEG_SLOPE * h)
    h = jnp.dot(h.astype(jnp.bfloat16), w2, preferred_element_type=jnp.float32) + b2
    h = jnp.dot(h.astype(jnp.bfloat16), w1, preferred_element_type=jnp.float32) + b1
    o_ref[...] = jnp.where(h > 0, h, NEG_SLOPE * h)


def encoder_mlp(x, w1, b1, w2, b2, block_rows=512):
    M, K = x.shape
    H = w1.shape[1]
    E = w2.shape[1]
    tm = min(block_rows, _round_up(M, 8))
    Mp = _round_up(M, tm)
    xp = _pad_rows(x.astype(jnp.bfloat16), Mp)
    out = pl.pallas_call(
        _encoder_kernel,
        out_shape=jax.ShapeDtypeStruct((Mp, E), jnp.float32),
        grid=(Mp // tm,),
        in_specs=[
            pl.BlockSpec((tm, K), lambda i: (i, 0)),
            pl.BlockSpec((K, H), lambda i: (0, 0)),
            pl.BlockSpec((1, H), lambda i: (0, 0)),
            pl.BlockSpec((H, E), lambda i: (0, 0)),
            pl.BlockSpec((1, E), lambda i: (0, 0)),
        ],
        out_specs=pl.BlockSpec((tm, E), lambda i: (i, 0)),
        compiler_params=pltpu.CompilerParams(dimension_semantics=("parallel",)),
    )(xp,
      w1.astype(jnp.bfloat16), b1.reshape(1, -1).astype(jnp.float32),
      w2.astype(jnp.bfloat16), b2.reshape(1, -1).astype(jnp.float32))
    return out[:M]


# ----------------------------------------------------------------------------
# Pallas kernel 2: fused L2 normalization (F.normalize(x, dim=1))
# norm + divide in the same block; lane-dense (tm, D) output; one HBM read.
# ----------------------------------------------------------------------------
def _l2norm_kernel(x_ref, o_ref):
    x = x_ref[...]
    n = jnp.sqrt(jnp.sum(x * x, axis=1, keepdims=True))
    o_ref[...] = x / jnp.maximum(n, NORM_EPS)


def l2_normalize(x, block_rows=1024):
    R, D = x.shape
    tm = min(block_rows, _round_up(R, 8))
    Rp = _round_up(R, tm)
    xp = _pad_rows(x.astype(jnp.float32), Rp)
    out = pl.pallas_call(
        _l2norm_kernel,
        out_shape=jax.ShapeDtypeStruct((Rp, D), jnp.float32),
        grid=(Rp // tm,),
        in_specs=[pl.BlockSpec((tm, D), lambda i: (i, 0))],
        out_specs=pl.BlockSpec((tm, D), lambda i: (i, 0)),
        compiler_params=pltpu.CompilerParams(dimension_semantics=("parallel",)),
    )(xp)
    return out[:R]


# ----------------------------------------------------------------------------
# Pallas kernel 3: fully fused contrastive loss terms + reg norms.
# Anchors (user_emb / pos_item_emb) are fed untiled as (B, E) and broadcast
# inside the kernel against the (B, K1, E) item blocks, so no K1x tiled copies
# are materialized in HBM.  L2-normalization for loss-1, the exp/temperature
# scoring and the stable -log(pos/total) reduction all happen in-block, so the
# only outputs are four (tm, 1) columns per row tile.
# ----------------------------------------------------------------------------
def _clc_fused_kernel(user_ref, pos_ref, feat_ref, inp_ref, emb_ref,
                      c1_ref, c2_ref, unorm_ref, inorm_ref, *, inv_temp):
    user = user_ref[...]          # (tm, E)
    pos = pos_ref[...]            # (tm, E)
    feat = feat_ref[...]          # (tm, K1, E)
    inp = inp_ref[...]            # (tm, K1, E)
    emb = emb_ref[...]            # (tm, K1, E)

    pos_n = pos / jnp.maximum(
        jnp.sqrt(jnp.sum(pos * pos, axis=-1, keepdims=True)), NORM_EPS)
    feat_n = feat / jnp.maximum(
        jnp.sqrt(jnp.sum(feat * feat, axis=-1, keepdims=True)), NORM_EPS)

    # loss-1 logits: normalize(pos_item_emb) . normalize(all_item_feat) / temp
    s1 = jnp.sum(pos_n[:, None, :] * feat_n, axis=-1) * inv_temp      # (tm, K1)
    # loss-2 logits: user_emb . all_item_input / temp (anchor broadcast over K1)
    s2 = jnp.sum(user[:, None, :] * inp, axis=-1) * inv_temp          # (tm, K1)

    def nll(logits):
        # -log(exp(l0) / sum(exp(l))) == logsumexp(l) - l0, max-subtracted.
        m = jnp.max(logits, axis=-1, keepdims=True)
        lse = jnp.log(jnp.sum(jnp.exp(logits - m), axis=-1, keepdims=True)) + m
        return lse - logits[:, 0:1]                                    # (tm, 1)

    c1_ref[...] = nll(s1)
    c2_ref[...] = nll(s2)
    # reg-loss norms: user row norm, and sum over K1 of item-embedding row norms
    unorm_ref[...] = jnp.sqrt(jnp.sum(user * user, axis=-1, keepdims=True))
    inorm_ref[...] = jnp.sum(jnp.sqrt(jnp.sum(emb * emb, axis=-1)),
                             axis=-1, keepdims=True)


def clc_fused_loss_terms(user_emb, pos_item_emb, all_item_feat, all_item_input,
                         all_item_emb, temp_value, block_rows=256):
    B, E = user_emb.shape
    K1 = all_item_feat.shape[1]
    tm = min(block_rows, _round_up(B, 8))
    Bp = _round_up(B, tm)
    args = tuple(
        _pad_rows(a.astype(jnp.float32), Bp)
        for a in (user_emb, pos_item_emb, all_item_feat, all_item_input, all_item_emb))
    kernel = functools.partial(_clc_fused_kernel, inv_temp=float(1.0 / temp_value))
    col = jax.ShapeDtypeStruct((Bp, 1), jnp.float32)
    c1, c2, unorm, inorm_sum = pl.pallas_call(
        kernel,
        out_shape=(col, col, col, col),
        grid=(Bp // tm,),
        in_specs=[
            pl.BlockSpec((tm, E), lambda i: (i, 0)),
            pl.BlockSpec((tm, E), lambda i: (i, 0)),
            pl.BlockSpec((tm, K1, E), lambda i: (i, 0, 0)),
            pl.BlockSpec((tm, K1, E), lambda i: (i, 0, 0)),
            pl.BlockSpec((tm, K1, E), lambda i: (i, 0, 0)),
        ],
        out_specs=(pl.BlockSpec((tm, 1), lambda i: (i, 0)),
                   pl.BlockSpec((tm, 1), lambda i: (i, 0)),
                   pl.BlockSpec((tm, 1), lambda i: (i, 0)),
                   pl.BlockSpec((tm, 1), lambda i: (i, 0))),
        compiler_params=pltpu.CompilerParams(dimension_semantics=("parallel",)),
    )(*args)
    return c1[:B, 0], c2[:B, 0], unorm[:B, 0], inorm_sum[:B, 0]


# ----------------------------------------------------------------------------
# CLCRec model (glue in plain JAX, hot paths in the kernels above)
# ----------------------------------------------------------------------------
class CLCRecPallas:
    def __init__(self, key, num_user, num_item, dim_E, v_feat, t_feat,
                 temp_value, num_neg, lr_lambda, alpha, cold_item,
                 mse_weight=0.0, num_sample=0.5):
        self.num_user = num_user
        self.num_item = num_item
        self.dim_E = dim_E
        self.num_neg = num_neg
        self.temp_value = temp_value
        self.lr_lambda = lr_lambda
        self.alpha = alpha
        self.mse_weight = mse_weight
        self.num_sample = num_sample

        self.v_feat = l2_normalize(v_feat.astype(jnp.float32))
        self.t_feat = l2_normalize(t_feat.astype(jnp.float32))
        dim_feat = self.v_feat.shape[1] + self.t_feat.shape[1]
        assert dim_feat == dim_E == 256, "reference encoder requires dim_E == dim_feat == 256"
        self.dim_feat = dim_feat

        k0, k1, k2, k3, k4 = jax.random.split(key, 5)
        n_emb = num_user + num_item
        # xavier_normal for id_embedding
        std_id = (2.0 / (n_emb + dim_E)) ** 0.5
        self.id_embedding = std_id * jax.random.normal(k0, (n_emb, dim_E), jnp.float32)
        # encoder_layer1: Linear(dim_feat, 256)  (stored as (in, out) for x @ W)
        std1 = (2.0 / (dim_feat + 256)) ** 0.5
        self.w1 = std1 * jax.random.normal(k1, (dim_feat, 256), jnp.float32)
        self.b1 = 0.01 * jax.random.normal(k2, (256,), jnp.float32)
        # encoder_layer2: Linear(256, dim_E)
        std2 = (2.0 / (256 + dim_E)) ** 0.5
        self.w2 = std2 * jax.random.normal(k3, (256, dim_E), jnp.float32)
        self.b2 = 0.01 * jax.random.normal(k4, (dim_E,), jnp.float32)
        # TODO(synk): self.MLP, self.bias, self.att_sum_layer are never used in
        # the reference forward pass, so they are not instantiated here.
        # TODO(synk): is_word=True scatter-mean text path not implemented.

        # feat_id = cold item global ids shifted to item-local indices
        self.feat_id = jnp.asarray(cold_item, jnp.int32) - num_user

    # ---- encoder: concat modality features, run fused MLP kernel -------------
    def encoder(self):
        feature = jnp.concatenate([self.v_feat, self.t_feat], axis=1)
        return encoder_mlp(feature, self.w1, self.b1, self.w2, self.b2)

    # ---- mixup helpers (gathers + scalar mix, glue) --------------------------
    def mixup(self, s1, s2, feature, batch_size, lam):
        id_emb = lam * self.id_embedding[s1] + (1.0 - lam) * self.id_embedding[s2]
        feat_emb = (lam * feature[s1[batch_size:] - self.num_user]
                    + (1.0 - lam) * feature[s2[batch_size:] - self.num_user])
        return id_emb[:batch_size, :], id_emb[batch_size:, :], feat_emb

    def mixup_ng(self, s1, s2, feature, lam):
        id_emb = lam * self.id_embedding[s1] + (1.0 - lam) * self.id_embedding[s2]
        feat_emb = (lam * feature[s1 - self.num_user]
                    + (1.0 - lam) * feature[s2 - self.num_user])
        return id_emb, feat_emb

    # ---- forward (align == 2) -------------------------------------------------
    def forward(self, user_tensor, item_tensor, aug_negs, rng):
        B = user_tensor.shape[0]
        E = self.dim_E
        aug_sample1 = jnp.concatenate([user_tensor[:, 0], item_tensor[:, 0]])
        aug_sample2 = jnp.concatenate([user_tensor[:, 1], item_tensor[:, 1]])
        neg_item_tensor = item_tensor[:, 2:].reshape(-1)
        neg_item_emb = self.id_embedding[neg_item_tensor].reshape(B, -1)

        feature = self.encoder()

        k1, k2, k3 = jax.random.split(rng, 3)
        # align_2: mixup of id embeddings / encoded features
        lam1 = jax.random.beta(k1, self.alpha, self.alpha)
        user_emb, pos_item_emb, pos_item_feature = self.mixup(
            aug_sample1, aug_sample2, feature, B, lam1)
        neg_item_feature = feature[neg_item_tensor - self.num_user].reshape(B, -1)

        s1 = aug_negs[:, :, 0]
        s2 = aug_negs[:, :, 1]
        lam2 = jax.random.beta(k2, self.alpha, self.alpha)
        emb, neg_feat_aug = self.mixup_ng(s1, s2, feature, lam2)
        emb = emb.reshape(B, -1)
        neg_feat_aug = neg_feat_aug.reshape(B, -1)
        neg_item_emb = neg_item_emb.at[..., : emb.shape[1]].set(emb)
        neg_item_feature = neg_item_feature.at[..., : neg_feat_aug.shape[1]].set(neg_feat_aug)

        K1 = 1 + self.num_neg
        all_item_embedding = jnp.concatenate(
            [pos_item_emb, neg_item_emb], axis=1).reshape(B * K1, E)
        all_item_feat = jnp.concatenate(
            [pos_item_feature, neg_item_feature], axis=1).reshape(B * K1, E)

        R = B * K1
        rand_index = jax.random.randint(k3, (int(R * self.num_sample),), 0, R)
        all_item_input = all_item_embedding.at[rand_index].set(all_item_feat[rand_index])

        # Fused kernel: per-row -log(pos/total) for both contrastive heads and
        # the reg-loss norms, all in one pass over the (B, K1, E) item blocks.
        c1_rows, c2_rows, user_norms, item_norm_sums = clc_fused_loss_terms(
            user_emb, pos_item_emb,
            all_item_feat.reshape(B, K1, E),
            all_item_input.reshape(B, K1, E),
            all_item_embedding.reshape(B, K1, E),
            self.temp_value)

        c_loss_1 = jnp.mean(c1_rows)
        c_loss_2 = jnp.mean(c2_rows)
        # mean over K1 identical tiled user rows == mean over the B user rows;
        # item norms were summed over K1 inside the kernel.
        reg_loss = (jnp.mean(user_norms) + jnp.mean(item_norm_sums) / K1) / 2.0

        # self.result side-effect buffer, computed functionally
        result = self.id_embedding.at[self.feat_id + self.num_user].set(
            feature[self.feat_id])

        mse_loss = 0.0  # align == 2 path
        total = (c_loss_1 * self.lr_lambda
                 + c_loss_2 * (1.0 - self.lr_lambda)
                 + self.mse_weight * mse_loss)
        return total, reg_loss, result


if __name__ == "__main__":
    key = jax.random.PRNGKey(0)
    num_user = 8
    num_item = 16
    dim_E = 256          # forced equal to dim_feat by the reference encoder structure
    num_neg = 3
    batch = 4

    kv, kt, kmodel, kdata, kfwd = jax.random.split(key, 5)
    v_feat = jax.random.normal(kv, (num_item, 128), jnp.float32)
    t_feat = jax.random.normal(kt, (num_item, 128), jnp.float32)
    cold_item = list(range(num_user + num_item // 2, num_user + num_item))  # global ids

    model = CLCRecPallas(
        kmodel, num_user, num_item, dim_E, v_feat, t_feat,
        temp_value=0.5, num_neg=num_neg, lr_lambda=0.5, alpha=0.5,
        cold_item=cold_item, mse_weight=0.0, num_sample=0.5)

    kd1, kd2, kd3 = jax.random.split(kdata, 3)
    user_tensor = jax.random.randint(kd1, (batch, 2), 0, num_user)
    item_tensor = jax.random.randint(kd2, (batch, 2 + num_neg),
                                     num_user, num_user + num_item)
    aug_negs = jax.random.randint(kd3, (batch, num_neg, 2),
                                  num_user, num_user + num_item)

    loss, reg_loss, result = model.forward(user_tensor, item_tensor, aug_negs, kfwd)
    jax.block_until_ready((loss, reg_loss, result))
    print("KERNEL_OK")
</pallas_src>

<mosaic_0001>
module attributes {stable_mosaic.version = 11 : i64} {
  func.func @_l2norm_kernel(%arg0: i32, %arg1: memref<16x128xf32, #tpu.memory_space<vmem>>, %arg2: memref<16x128xf32, #tpu.memory_space<vmem>>) attributes {dimension_semantics = [#tpu.dimension_semantics<parallel>], iteration_bounds = array<i64: 1>, scalar_prefetch = 0 : i64, scratch_operands = 0 : i64, tpu.core_type = #tpu.core_type<tc>, window_params = [{transform_indices = @transform_0, window_bounds = array<i64: 16, 128>}, {transform_indices = @transform_1, window_bounds = array<i64: 16, 128>}]} {
    %c0 = arith.constant 0 : index
    %c0_0 = arith.constant 0 : index
    %0 = vector.load %arg1[%c0, %c0_0] : memref<16x128xf32, #tpu.memory_space<vmem>>, vector<16x128xf32>
    %1 = arith.mulf %0, %0 : vector<16x128xf32>
    %cst = arith.constant dense<0.000000e+00> : vector<16xf32>
    %2 = vector.multi_reduction <add>, %1, %cst [1] : vector<16x128xf32> to vector<16xf32>
    %3 = vector.shape_cast %2 : vector<16xf32> to vector<16x1xf32>
    %4 = math.sqrt %3 : vector<16x1xf32>
    %cst_1 = arith.constant 9.99999996E-13 : f32
    %5 = vector.broadcast %cst_1 : f32 to vector<16x1xf32>
    %6 = arith.maximumf %4, %5 : vector<16x1xf32>
    %7 = vector.broadcast %6 : vector<16x1xf32> to vector<16x128xf32>
    %8 = arith.divf %0, %7 : vector<16x128xf32>
    %c0_2 = arith.constant 0 : index
    %c0_3 = arith.constant 0 : index
    %9 = vector.load %arg2[%c0_2, %c0_3] : memref<16x128xf32, #tpu.memory_space<vmem>>, vector<16x128xf32>
    tpu.vector_store %arg2[%c0_2, %c0_3], %8 {strides = array<i32>} : memref<16x128xf32, #tpu.memory_space<vmem>>, vector<16x128xf32>,
    return
  }
  func.func @transform_0(%arg0: i32) -> (i32, i32) {
    %c0_i32 = arith.constant 0 : i32
    %c0_i32_0 = arith.constant 0 : i32
    return %arg0, %c0_i32 : i32, i32
  }
  func.func @transform_1(%arg0: i32) -> (i32, i32) {
    %c0_i32 = arith.constant 0 : i32
    %c0_i32_0 = arith.constant 0 : i32
    return %arg0, %c0_i32 : i32, i32
  }
}

</mosaic_0001>

<llo_original>
// kernel: tpu_custom_call.1
$region0: #{tpu_custom_call.1}
  #allocation0 [shape = 'u32[]', space=smem, size = 0x4, offset = 0x4, fixed_abs, tag = 'smem constant byte address 0x4 - core index']
  #allocation1 [shape = 'u32[144,128]{1,0:T(1,128)}', space=vmem, size = 0x12000, scoped, tag = 'internal scratch']
  %s0 = inlined_call_operand.hbm [shape: f32[16,128], index: 0, kind: input, shape index: {}]
  %s1 = inlined_call_operand.hbm [shape: f32[16,128], index: 1, kind: output, shape index: {}]
  %s2 = sld [smem:[#allocation0]]
  $region18: #{tpu_custom_call.1} parent=0
    _
  %s4 = ssub.s32 1, %s2
  %s5 = scalar_select 0, %s4, %s2
  $region1: #{tpu_custom_call.1} parent=0
    #allocation2 [shape = 'u8[8192]{0}', space=vmem, size = 0x2000, scoped, tag = 'input window, operand 0, single buffered']
    #allocation3 [shape = 's32[1]{0}', space=sflag, size = 0x4, scoped, tag = 'scoped memory for tpu_custom_call.1']
    #allocation4 [shape = 's32[1]{0}', space=sflag, size = 0x4, scoped, tag = 'scoped memory for tpu_custom_call.1']
    #allocation5 [shape = 'u8[8192]{0}', space=vmem, size = 0x2000, scoped, tag = 'output window, operand 0, single buffered']
    %6 = vsyncpa [#allocation3], 0
    %7 = vsyncpa [#allocation4], 0
    // Predicated region
    $region2: #{tpu_custom_call.1} parent=1 // pred_check
      _
    $region3: #{tpu_custom_call.1} parent=1 // pred_check_branch
      %9 = sbr.rel (0) target = $region5
    $region4: #{tpu_custom_call.1} parent=1 // pred_region
      %s11 = ssub.s32 256, 256
      %12 = vsyncadd [#allocation3], %s11
      %s13 = sshll.u32 [#allocation2], 4
      %s14 = int_to_ptr.vmem [resolvable:$true] %s13
      %19 = dma.hbm_to_vmem [thread:$0]  %s0, 256, %s14, [#allocation3], 128, 128, 8
    $region5: #{tpu_custom_call.1} parent=1 // pred_fallthru
      _
    // Predicated region
    $region6: #{tpu_custom_call.1} parent=1 // pred_check
      _
    $region7: #{tpu_custom_call.1} parent=1 // pred_check_branch
      %21 = sbr.rel (0) target = $region9
    $region8: #{tpu_custom_call.1} parent=1 // pred_region
      %22 = dma.done [#allocation3], 256
    $region9: #{tpu_custom_call.1} parent=1 // pred_fallthru
      _
    %v23 = vld [vmem:[#allocation2] sm:$0xff]
    %v24 = vld [vmem:[#allocation2 + $0x8] sm:$0xff]
    %v25 = vmul.f32 %v23, %v23
    %v26 = vmul.f32 %v24, %v24
    %27 = vadd.xlane.f32.xlu0 %v25
    %v28 = vpop.xlane.xlu0 %27
    %29 = vadd.xlane.f32.xlu0 %v26
    %v30 = vpop.xlane.xlu0 %29
    %v31 = vrsqrt.pop %v28
    %v32 = vmul.f32 %v28, %v31
    %vm33 = vcmp.eq.f32.partialorder %v28, inf
    %v34 = vsel %vm33, %v28, %v32
    %vm35 = vcmp.eq.f32.partialorder %v28, 0.0
    %v36 = vand.u32 %v28, 2147483648
    %v37 = vsel %vm35, %v36, %v34
    %v38 = vrsqrt.pop %v30
    %v39 = vmul.f32 %v30, %v38
    %vm40 = vcmp.eq.f32.partialorder %v30, inf
    %v41 = vsel %vm40, %v30, %v39
    %vm42 = vcmp.eq.f32.partialorder %v30, 0.0
    %v43 = vand.u32 %v30, 2147483648
    %v44 = vsel %vm42, %v43, %v41
    %v45 = vmax.f32 %v37, 1e-12
    %v46 = vmax.f32 %v44, 1e-12
    %v47 = vrcp.pop %v45
    %v48 = vmul.f32 %v23, %v47
    %v49 = vrcp.pop %v46
    %v50 = vmul.f32 %v24, %v49
    %51 = vst [vmem:[#allocation5] sm:$0xff] %v48
    %52 = vst [vmem:[#allocation5 + $0x8] sm:$0xff] %v50
    // Predicated region
    $region10: #{tpu_custom_call.1} parent=1 // pred_check
      _
    $region11: #{tpu_custom_call.1} parent=1 // pred_check_branch
      %54 = sbr.rel (0) target = $region13
    $region12: #{tpu_custom_call.1} parent=1 // pred_region
      %s56 = ssub.s32 256, 256
      %57 = vsyncadd [#allocation4], %s56
      %s58 = sshll.u32 [#allocation5], 4
      %s59 = int_to_ptr.vmem [resolvable:$true] %s58
      %64 = dma.vmem_to_hbm [thread:$0]  %s59, 256, %s1, [#allocation4], 128, 128, 8
    $region13: #{tpu_custom_call.1} parent=1 // pred_fallthru
      _
    // Predicated region
    $region14: #{tpu_custom_call.1} parent=1 // pred_check
      _
    $region15: #{tpu_custom_call.1} parent=1 // pred_check_branch
      %66 = sbr.rel (0) target = $region17
    $region16: #{tpu_custom_call.1} parent=1 // pred_region
      %67 = dma.done [#allocation4], 256
    $region17: #{tpu_custom_call.1} parent=1 // pred_fallthru
      _
    %68 = vsyncpa [#allocation3], 1
    %69 = vsyncpa [#allocation4], 1

</llo_original>
